<compile_context>
chip_gen: v5e
topology: v5e:2x2
jax: 0.10.0
libtpu: 0.0.40
codegen_flags: <defaults>
</compile_context>

<pallas_src>
import jax
import jax.numpy as jnp
from jax.experimental import pallas as pl
from jax.experimental.pallas import tpu as pltpu


def _round_up(x: int, m: int) -> int:
    return ((x + m - 1) // m) * m


def _ceil_div(a: int, b: int) -> int:
    return -(-a // b)


def _pick_tile(dim: int, granule: int, cap: int) -> int:
    """Balanced tile: a multiple of `granule`, <= cap, minimizing padding."""
    chunks = _ceil_div(dim, granule)
    cap_chunks = max(1, cap // granule)
    nblocks = _ceil_div(chunks, cap_chunks)
    tile_chunks = _ceil_div(chunks, nblocks)
    return tile_chunks * granule


def _linear_kernel_f32_out(x_ref, w_ref, b_ref, o_ref):
    # x_ref: (tile_n, tile_k)  w_ref: (tile_k, tile_o)  b_ref: (1, tile_o) f32
    # o_ref: (tile_n, tile_o) f32 -- its index map is k-independent, so it is
    # resident across the K reduction and doubles as the accumulator.
    k = pl.program_id(2)

    @pl.when(k == 0)
    def _():
        o_ref[...] = jnp.broadcast_to(b_ref[...], o_ref.shape)

    o_ref[...] += jnp.dot(
        x_ref[...], w_ref[...], preferred_element_type=jnp.float32
    )


def _linear_kernel_acc(x_ref, w_ref, b_ref, o_ref, acc_ref):
    # Narrow output dtypes (bf16 / fp8): keep an f32 VMEM accumulator, cast on
    # the final K step only.
    k = pl.program_id(2)

    @pl.when(k == 0)
    def _():
        acc_ref[...] = jnp.broadcast_to(b_ref[...], acc_ref.shape)

    acc_ref[...] += jnp.dot(
        x_ref[...], w_ref[...], preferred_element_type=jnp.float32
    )

    @pl.when(k == pl.num_programs(2) - 1)
    def _():
        o_ref[...] = acc_ref[...].astype(o_ref.dtype)


def linear_custom(inputs, weights, biases, *, tile_n=None, tile_k=None,
                  tile_o=None, compute_dtype=None, weight_buffers=2,
                  xla_fallback_max_flops=None):
    """Pallas equivalent of LinearCustom.forward(inputs, [weights, biases])."""
    N, F = inputs.shape
    F_w, O = weights.shape
    assert F == F_w, "in_dim mismatch"
    assert biases.shape == (O,)

    out_dtype = jnp.promote_types(inputs.dtype, weights.dtype)
    if compute_dtype is None:
        compute_dtype = out_dtype

    # Tiny-shape escape hatch: below this many MACs, per-call dispatch and
    # pad/slice overhead dominate any dedicated kernel. Disabled by default.
    if (xla_fallback_max_flops is not None
            and 2 * N * F * O <= xla_fallback_max_flops):
        acc = jnp.dot(inputs.astype(compute_dtype),
                      weights.astype(compute_dtype),
                      preferred_element_type=jnp.float32)
        return (acc + biases.astype(jnp.float32)).astype(out_dtype)

    x = inputs.astype(compute_dtype)
    w = weights.astype(compute_dtype)
    b = biases.astype(jnp.float32)

    # Sublane granularity for the batch (second-to-last) dim of the input tile.
    sub = 16 if compute_dtype == jnp.bfloat16 else 8

    # --- per-generation scoped-VMEM budget.
    try:
        vmem_cap = pltpu.get_tpu_info().vmem_capacity_bytes
    except Exception:
        vmem_cap = None
    if vmem_cap is not None and vmem_cap >= 128 * 1024 * 1024:
        vmem_limit = 64 * 1024 * 1024   # v5e / v6e: 128 MiB physical VMEM
    else:
        vmem_limit = 48 * 1024 * 1024   # v7x: 64 MiB physical per TC (or unknown)

    # --- tile selection: sublane-aligned N tile, 128-aligned K/O tiles.
    tile_n_auto = tile_n is None
    tile_o_auto = tile_o is None
    cap_n = 1024 if compute_dtype == jnp.bfloat16 else 512
    if tile_n is None:
        tile_n = _pick_tile(N, sub, cap_n)
    if tile_k is None:
        tile_k = _pick_tile(F, 128, 512)
    if tile_o is None:
        tile_o = _pick_tile(O, 128, 512)

    # Megacore: ensure >= 2 blocks on a "parallel" axis (prefer splitting O
    # over shrinking N). Only touches auto-chosen tiles.
    if _ceil_div(N, tile_n) * _ceil_div(O, tile_o) == 1:
        o_chunks = _ceil_div(O, 128)
        n_chunks = _ceil_div(N, sub)
        if tile_o_auto and o_chunks >= 2:
            tile_o = _pick_tile(O, 128, max(128, (o_chunks // 2) * 128))
        elif tile_n_auto and n_chunks >= 2:
            tile_n = _pick_tile(N, sub, max(sub, (n_chunks // 2) * sub))

    assert tile_n % sub == 0, "tile_n must be a multiple of the sublane size"
    assert tile_k % 128 == 0 and tile_o % 128 == 0, \
        "tile_k / tile_o must be multiples of 128"

    # --- zero-pad so every dim divides its tile. Zero K padding keeps the
    #     reduction exact; padded N rows / O cols are sliced off afterwards.
    Np = _round_up(N, tile_n)
    Fp = _round_up(F, tile_k)
    Op = _round_up(O, tile_o)
    if (Np, Fp) != (N, F):
        x = jnp.pad(x, ((0, Np - N), (0, Fp - F)))
    if (Fp, Op) != (F, O):
        w = jnp.pad(w, ((0, Fp - F), (0, Op - O)))
    if Op != O:
        b = jnp.pad(b, (0, Op - O))
    b2d = b.reshape(1, Op)

    grid = (Np // tile_n, Op // tile_o, Fp // tile_k)   # reduction axis last

    x_bytes = jnp.dtype(compute_dtype).itemsize
    o_bytes = jnp.dtype(out_dtype).itemsize
    cost = pl.CostEstimate(
        flops=2 * Np * Fp * Op,
        transcendentals=0,
        bytes_accessed=(grid[1] * Np * Fp * x_bytes      # x re-read per O block
                        + grid[0] * Fp * Op * x_bytes    # w re-read per N block
                        + Np * Op * o_bytes              # output written once
                        + grid[0] * grid[2] * Op * 4),   # bias re-reads (f32)
    )

    w_spec_kwargs = {}
    if weight_buffers != 2:
        # Deeper weight buffering for small-tile_n, weight-bandwidth-bound use.
        w_spec_kwargs = dict(pipeline_mode=pl.Buffered(weight_buffers))
    in_specs = [
        pl.BlockSpec((tile_n, tile_k), lambda i, j, k: (i, k)),   # inputs
        pl.BlockSpec((tile_k, tile_o), lambda i, j, k: (k, j),    # weights
                     **w_spec_kwargs),
        pl.BlockSpec((1, tile_o), lambda i, j, k: (0, j)),        # bias row
    ]
    out_spec = pl.BlockSpec((tile_n, tile_o), lambda i, j, k: (i, j))

    if out_dtype == jnp.float32:
        kernel = _linear_kernel_f32_out
        scratch_shapes = []
    else:
        kernel = _linear_kernel_acc
        scratch_shapes = [pltpu.VMEM((tile_n, tile_o), jnp.float32)]

    out_padded = pl.pallas_call(
        kernel,
        out_shape=jax.ShapeDtypeStruct((Np, Op), out_dtype),
        grid=grid,
        in_specs=in_specs,
        out_specs=out_spec,
        scratch_shapes=scratch_shapes,
        compiler_params=pltpu.CompilerParams(
            dimension_semantics=("parallel", "parallel", "arbitrary"),
            vmem_limit_bytes=vmem_limit,
        ),
        cost_estimate=cost,
    )(x, w, b2d)

    if (Np, Op) != (N, O):
        out_padded = out_padded[:N, :O]
    return out_padded


if __name__ == "__main__":
    key = jax.random.PRNGKey(0)
    keys = jax.random.split(key, 9)

    # 1) Tiny shape matching the module's intended per-edge use (f32,
    #    single grid step, accumulate-in-o_ref path).
    N, in_dim, out_dim = 8, 32, 16
    x = jax.random.normal(keys[0], (N, in_dim), dtype=jnp.float32)
    w = jax.random.normal(keys[1], (in_dim, out_dim), dtype=jnp.float32) * 0.1
    b = jax.random.normal(keys[2], (out_dim,), dtype=jnp.float32) * 0.1
    out = jax.block_until_ready(linear_custom(x, w, b))
    ref = jnp.dot(x, w, precision=jax.lax.Precision.HIGHEST) + b
    assert out.shape == (N, out_dim)
    assert jnp.allclose(out, ref, atol=1e-2, rtol=1e-2), "mismatch (tiny)"

    # 2) Ragged f32 shape with auto tiles: multi-K grid, megacore O split,
    #    pad / slice path, direct accumulation into the output block.
    N2, F2, O2 = 96, 640, 384
    x2 = jax.random.normal(keys[3], (N2, F2), dtype=jnp.float32) * 0.1
    w2 = jax.random.normal(keys[4], (F2, O2), dtype=jnp.float32) * 0.05
    b2 = jax.random.normal(keys[5], (O2,), dtype=jnp.float32) * 0.1
    out2 = jax.block_until_ready(linear_custom(x2, w2, b2))
    ref2 = jnp.dot(x2, w2, precision=jax.lax.Precision.HIGHEST) + b2
    assert out2.shape == (N2, O2)
    assert jnp.allclose(out2, ref2, atol=1e-2, rtol=1e-2), "mismatch (ragged)"

    # 3) bf16 path: exercises the f32 VMEM accumulator + cast epilogue.
    N3, F3, O3 = 64, 256, 256
    x3 = jax.random.normal(keys[6], (N3, F3), dtype=jnp.bfloat16) * 0.1
    w3 = jax.random.normal(keys[7], (F3, O3), dtype=jnp.bfloat16) * 0.05
    b3 = jax.random.normal(keys[8], (O3,), dtype=jnp.bfloat16) * 0.1
    out3 = jax.block_until_ready(linear_custom(x3, w3, b3))
    ref3 = (jnp.dot(x3.astype(jnp.float32), w3.astype(jnp.float32),
                    precision=jax.lax.Precision.HIGHEST)
            + b3.astype(jnp.float32)).astype(jnp.bfloat16)
    assert out3.shape == (N3, O3)
    assert jnp.allclose(out3.astype(jnp.float32), ref3.astype(jnp.float32),
                        atol=5e-2, rtol=5e-2), "mismatch (bf16)"

    print("KERNEL_OK")
</pallas_src>

<mosaic_0001>
module attributes {stable_mosaic.version = 11 : i64} {
  func.func @_linear_kernel_f32_out(%arg0: i32, %arg1: i32, %arg2: i32, %arg3: memref<8x128xf32, #tpu.memory_space<vmem>>, %arg4: memref<128x128xf32, #tpu.memory_space<vmem>>, %arg5: memref<1x128xf32, #tpu.memory_space<vmem>>, %arg6: memref<8x128xf32, #tpu.memory_space<vmem>>) attributes {dimension_semantics = [#tpu.dimension_semantics<parallel>, #tpu.dimension_semantics<parallel>, #tpu.dimension_semantics<arbitrary>], iteration_bounds = array<i64: 1, 1, 1>, scalar_prefetch = 0 : i64, scratch_operands = 0 : i64, tpu.core_type = #tpu.core_type<tc>, window_params = [{transform_indices = @transform_0, window_bounds = array<i64: 8, 128>}, {transform_indices = @transform_1, window_bounds = array<i64: 128, 128>}, {transform_indices = @transform_2, window_bounds = array<i64: 1, 128>}, {transform_indices = @transform_3, window_bounds = array<i64: 8, 128>}]} {
    %c0_i32 = arith.constant 0 : i32
    %0 = arith.cmpi eq, %arg2, %c0_i32 : i32
    %1 = arith.extui %0 : i1 to i32
    %c0_i32_0 = arith.constant 0 : i32
    %2 = arith.cmpi ne, %1, %c0_i32_0 : i32
    scf.if %2 {
      %c0_8 = arith.constant 0 : index
      %c0_9 = arith.constant 0 : index
      %9 = vector.load %arg5[%c0_8, %c0_9] : memref<1x128xf32, #tpu.memory_space<vmem>>, vector<1x128xf32>
      %10 = vector.shape_cast %9 : vector<1x128xf32> to vector<1x128xf32>
      %11 = vector.broadcast %10 : vector<1x128xf32> to vector<8x128xf32>
      %c0_10 = arith.constant 0 : index
      %c0_11 = arith.constant 0 : index
      %12 = vector.load %arg6[%c0_10, %c0_11] : memref<8x128xf32, #tpu.memory_space<vmem>>, vector<8x128xf32>
      tpu.vector_store %arg6[%c0_10, %c0_11], %11 {strides = array<i32>} : memref<8x128xf32, #tpu.memory_space<vmem>>, vector<8x128xf32>,
    } else {
    }
    %c0 = arith.constant 0 : index
    %c0_1 = arith.constant 0 : index
    %3 = vector.load %arg6[%c0, %c0_1] : memref<8x128xf32, #tpu.memory_space<vmem>>, vector<8x128xf32>
    %c0_2 = arith.constant 0 : index
    %c0_3 = arith.constant 0 : index
    %4 = vector.load %arg3[%c0_2, %c0_3] : memref<8x128xf32, #tpu.memory_space<vmem>>, vector<8x128xf32>
    %c0_4 = arith.constant 0 : index
    %c0_5 = arith.constant 0 : index
    %5 = vector.load %arg4[%c0_4, %c0_5] : memref<128x128xf32, #tpu.memory_space<vmem>>, vector<128x128xf32>
    %cst = arith.constant dense<0.000000e+00> : vector<8x128xf32>
    %6 = tpu.matmul %4, %5, %cst {dimension_numbers = #tpu.dot_dimension_numbers<[1], [0], [0], [1], [0, 0, 1, 1], [], []>} : vector<8x128xf32>, vector<128x128xf32>, vector<8x128xf32> -> vector<8x128xf32>
    %7 = arith.addf %3, %6 : vector<8x128xf32>
    %c0_6 = arith.constant 0 : index
    %c0_7 = arith.constant 0 : index
    %8 = vector.load %arg6[%c0_6, %c0_7] : memref<8x128xf32, #tpu.memory_space<vmem>>, vector<8x128xf32>
    tpu.vector_store %arg6[%c0_6, %c0_7], %7 {strides = array<i32>} : memref<8x128xf32, #tpu.memory_space<vmem>>, vector<8x128xf32>,
    return
  }
  func.func @transform_0(%arg0: i32, %arg1: i32, %arg2: i32) -> (i32, i32) {
    %c0_i32 = arith.constant 0 : i32
    return %arg0, %arg2 : i32, i32
  }
  func.func @transform_1(%arg0: i32, %arg1: i32, %arg2: i32) -> (i32, i32) {
    %c0_i32 = arith.constant 0 : i32
    return %arg2, %arg1 : i32, i32
  }
  func.func @transform_2(%arg0: i32, %arg1: i32, %arg2: i32) -> (i32, i32) {
    %c0_i32 = arith.constant 0 : i32
    %c0_i32_0 = arith.constant 0 : i32
    return %c0_i32, %arg1 : i32, i32
  }
  func.func @transform_3(%arg0: i32, %arg1: i32, %arg2: i32) -> (i32, i32) {
    %c0_i32 = arith.constant 0 : i32
    return %arg0, %arg1 : i32, i32
  }
}

</mosaic_0001>

<llo_original>
// kernel: tpu_custom_call.1
$region0: #{tpu_custom_call.1}
  #allocation0 [shape = 'u32[]', space=smem, size = 0x4, offset = 0x4, fixed_abs, tag = 'smem constant byte address 0x4 - core index']
  #allocation1 [shape = 'u32[72,128]{1,0:T(1,128)}', space=vmem, size = 0x9000, scoped, tag = 'internal scratch']
  %s0 = inlined_call_operand.hbm [shape: f32[8,128], index: 0, kind: input, shape index: {}]
  %s1 = inlined_call_operand.hbm [shape: f32[128,128], index: 1, kind: input, shape index: {}]
  %s2 = inlined_call_operand.vmem [shape: f32[1,128], index: 2, kind: input, shape index: {}]
  %s3 = inlined_call_operand.hbm [shape: f32[8,128], index: 3, kind: output, shape index: {}]
  %s4 = sld [smem:[#allocation0]]
  $region34: #{tpu_custom_call.1} parent=0
    _
  %s6 = ssub.s32 1, %s4
  %s7 = scalar_select 0, %s6, %s4
  $region1: #{tpu_custom_call.1} parent=0
    #allocation2 [shape = 'u8[4096]{0}', space=vmem, size = 0x1000, scoped, tag = 'input window, operand 0, single buffered']
    #allocation3 [shape = 's32[1]{0}', space=sflag, size = 0x4, scoped, tag = 'scoped memory for tpu_custom_call.1']
    #allocation4 [shape = 's32[1]{0}', space=sflag, size = 0x4, scoped, tag = 'scoped memory for tpu_custom_call.1']
    #allocation5 [shape = 'u8[65536]{0}', space=vmem, size = 0x10000, scoped, tag = 'input window, operand 1, single buffered']
    #allocation6 [shape = 's32[1]{0}', space=sflag, size = 0x4, scoped, tag = 'scoped memory for tpu_custom_call.1']
    #allocation7 [shape = 'u8[4096]{0}', space=vmem, size = 0x1000, scoped, tag = 'output window, operand 0, single buffered']
    %8 = vsyncpa [#allocation3], 0
    %9 = vsyncpa [#allocation6], 0
    %10 = vsyncpa [#allocation4], 0
    // Predicated region
    $region2: #{tpu_custom_call.1} parent=1 // pred_check
      _
    $region3: #{tpu_custom_call.1} parent=1 // pred_check_branch
      %12 = sbr.rel (0) target = $region5
    $region4: #{tpu_custom_call.1} parent=1 // pred_region
      %14 = vsyncadd [#allocation3], 0
      %s16 = sshll.u32 %s0, 4
      %s17 = int_to_ptr.hbm [resolvable:$true] %s16
      %s18 = sshll.u32 [#allocation2], 4
      %s19 = int_to_ptr.vmem [resolvable:$true] %s18
      %21 = dma.hbm_to_vmem [thread:$0]  %s17, 128, %s19, [#allocation3]
    $region5: #{tpu_custom_call.1} parent=1 // pred_fallthru
      _
    // Predicated region
    $region6: #{tpu_custom_call.1} parent=1 // pred_check
      _
    $region7: #{tpu_custom_call.1} parent=1 // pred_check_branch
      %23 = sbr.rel (0) target = $region9
    $region8: #{tpu_custom_call.1} parent=1 // pred_region
      %25 = vsyncadd [#allocation6], 0
      %s26 = sshll.u32 %s1, 4
      %s27 = int_to_ptr.hbm [resolvable:$true] %s26
      %s28 = sshll.u32 [#allocation5], 4
      %s29 = int_to_ptr.vmem [resolvable:$true] %s28
      %34 = dma.hbm_to_vmem [thread:$0]  %s27, 2048, %s29, [#allocation6], 128, 128, 8
    $region9: #{tpu_custom_call.1} parent=1 // pred_fallthru
      _
    // Predicated region
    $region10: #{tpu_custom_call.1} parent=1 // pred_check
      _
    $region11: #{tpu_custom_call.1} parent=1 // pred_check_branch
      %36 = sbr.rel (0) target = $region13
    $region12: #{tpu_custom_call.1} parent=1 // pred_region
      _
    $region13: #{tpu_custom_call.1} parent=1 // pred_fallthru
      _
    // Predicated region
    $region14: #{tpu_custom_call.1} parent=1 // pred_check
      _
    $region15: #{tpu_custom_call.1} parent=1 // pred_check_branch
      %38 = sbr.rel (0) target = $region17
    $region16: #{tpu_custom_call.1} parent=1 // pred_region
      %40 = dma.done [#allocation3], 128
    $region17: #{tpu_custom_call.1} parent=1 // pred_fallthru
      _
    // Predicated region
    $region18: #{tpu_custom_call.1} parent=1 // pred_check
      _
    $region19: #{tpu_custom_call.1} parent=1 // pred_check_branch
      %42 = sbr.rel (0) target = $region21
    $region20: #{tpu_custom_call.1} parent=1 // pred_region
      %44 = dma.done [#allocation6], 2048
    $region21: #{tpu_custom_call.1} parent=1 // pred_fallthru
      _
    %p45 = scmp.eq.s32.totalorder 0, 0
    // Predicated region
    $region22: #{tpu_custom_call.1} parent=1 // pred_check
      %p46 = pneg %p45
    $region23: #{tpu_custom_call.1} parent=1 // pred_check_branch
      %48 = sbr.rel (%p46) target = $region25
    $region24: #{tpu_custom_call.1} parent=1 // pred_region
      %v49 = vld [vmem:[%s2] sm:$0x1]
      %v51 = vperm.slane %v49, 0
      %53 = vst [vmem:[#allocation7] sm:$0xff] %v51
    $region25: #{tpu_custom_call.1} parent=1 // pred_fallthru
      _
    %v54 = vld [vmem:[#allocation7] sm:$0xff]
    %v55 = vld [vmem:[#allocation2] sm:$0xff]
    %v56 = vld [vmem:[#allocation5] sm:$0xff]
    %v57 = vld [vmem:[#allocation5 + $0x8] sm:$0xff]
    %v58 = vld [vmem:[#allocation5 + $0x10] sm:$0xff]
    %v59 = vld [vmem:[#allocation5 + $0x18] sm:$0xff]
    %v60 = vld [vmem:[#allocation5 + $0x20] sm:$0xff]
    %v61 = vld [vmem:[#allocation5 + $0x28] sm:$0xff]
    %v62 = vld [vmem:[#allocation5 + $0x30] sm:$0xff]
    %v63 = vld [vmem:[#allocation5 + $0x38] sm:$0xff]
    %v64 = vld [vmem:[#allocation5 + $0x40] sm:$0xff]
    %v65 = vld [vmem:[#allocation5 + $0x48] sm:$0xff]
    %v66 = vld [vmem:[#allocation5 + $0x50] sm:$0xff]
    %v67 = vld [vmem:[#allocation5 + $0x58] sm:$0xff]
    %v68 = vld [vmem:[#allocation5 + $0x60] sm:$0xff]
    %v69 = vld [vmem:[#allocation5 + $0x68] sm:$0xff]
    %v70 = vld [vmem:[#allocation5 + $0x70] sm:$0xff]
    %v71 = vld [vmem:[#allocation5 + $0x78] sm:$0xff]
    %72 = vmatpush.msra.mxu0 %v71
    %73 = vmatpush.msra.mxu0 %v70
    %74 = vmatpush.msra.mxu0 %v69
    %75 = vmatpush.msra.mxu0 %v68
    %76 = vmatpush.msra.mxu0 %v67
    %77 = vmatpush.msra.mxu0 %v66
    %78 = vmatpush.msra.mxu0 %v65
    %79 = vmatpush.msra.mxu0 %v64
    %80 = vmatpush.msra.mxu0 %v63
    %81 = vmatpush.msra.mxu0 %v62
    %82 = vmatpush.msra.mxu0 %v61
    %83 = vmatpush.msra.mxu0 %v60
    %84 = vmatpush.msra.mxu0 %v59
    %85 = vmatpush.msra.mxu0 %v58
    %86 = vmatpush.msra.mxu0 %v57
    %87 = vmatpush.msra.mxu0 %v56
    %88 = vmatmul.f32.gmra.mxu0 %v55
    %v89 = vpop.f32.mrf.mxu0
    %v90 = vadd.f32 0.0, %v89
    %91 = vdwg.mxu0
    %v92 = vadd.f32 %v54, %v90
    %93 = vst [vmem:[#allocation7] sm:$0xff] %v92
    // Predicated region
    $region26: #{tpu_custom_call.1} parent=1 // pred_check
      _
    $region27: #{tpu_custom_call.1} parent=1 // pred_check_branch
      %95 = sbr.rel (0) target = $region29
    $region28: #{tpu_custom_call.1} parent=1 // pred_region
      %97 = vsyncadd [#allocation4], 0
      %s99 = sshll.u32 [#allocation7], 4
      %s100 = int_to_ptr.vmem [resolvable:$true] %s99
      %s101 = sshll.u32 %s3, 4
      %s102 = int_to_ptr.hbm [resolvable:$true] %s101
      %104 = dma.vmem_to_hbm [thread:$0]  %s100, 128, %s102, [#allocation4]
    $region29: #{tpu_custom_call.1} parent=1 // pred_fallthru
      _
    // Predicated region
    $region30: #{tpu_custom_call.1} parent=1 // pred_check
      _
    $region31: #{tpu_custom_call.1} parent=1 // pred_check_branch
      %106 = sbr.rel (0) target = $region33
    $region32: #{tpu_custom_call.1} parent=1 // pred_region
      %108 = dma.done [#allocation4], 128
    $region33: #{tpu_custom_call.1} parent=1 // pred_fallthru
      _
    %109 = vsyncpa [#allocation3], 1
    %110 = vsyncpa [#allocation6], 1
    %111 = vsyncpa [#allocation4], 1

</llo_original>
